<compile_context>
chip_gen: v6e
topology: v6e:2x2x1
jax: 0.10.0
libtpu: 0.0.40
codegen_flags: <defaults>
</compile_context>

<pallas_src>
import functools

import numpy as np
import jax
import jax.numpy as jnp
from jax.experimental import pallas as pl
from jax.experimental.pallas import tpu as pltpu


def _round_up(x: int, m: int) -> int:
    return (x + m - 1) // m * m


@functools.lru_cache(maxsize=None)
def _gram_pad(h: int, w: int) -> jnp.ndarray:
    """3x3 Gram matrix G^T G of the (h*w, 3) grid-point matrix, zero-padded to (8, 8).

    Mirrors GeometricTnfAffine.__init__ grid construction (which, as written in
    torch, requires h == w).  Point ordering is irrelevant for the Gram matrix.
    """
    assert h == w, "GeometricTnfAffine as written requires h == w"
    xs = np.linspace(-1.0, 1.0, w)
    ys = np.linspace(-1.0, 1.0, h)
    X, Y = np.meshgrid(xs, ys)                                      # (h, w) each
    G = np.stack([X.ravel(), Y.ravel(), np.ones(h * w)], axis=1)    # (h*w, 3)
    gram = G.T @ G                                                  # (3, 3) in f64
    out = np.zeros((8, 8), np.float32)
    out[:3, :3] = gram.astype(np.float32)
    return jnp.asarray(out)


def _make_grid(h: int, w: int, scale_factor: float = 1.0) -> jnp.ndarray:
    """Full (h*w, 3) grid — only used by the pure-JAX reference check."""
    assert h == w, "GeometricTnfAffine as written requires h == w"
    X, Y = np.meshgrid(np.linspace(-1.0, 1.0, w), np.linspace(-1.0, 1.0, h))
    g = np.stack([X, Y], axis=0)                 # (2, h, w)
    g = np.transpose(g, (2, 1, 0))               # (w, h, 2)  == .transpose(0, -1)
    g = g / scale_factor
    g = np.concatenate([g, np.ones((h, w, 1))], axis=-1)   # (h, w, 3): [x_a, y_b, 1]
    return jnp.asarray(g.reshape(h * w, 3), dtype=jnp.float32)


def _grid_loss_kernel(inv_denom_ref, gram_ref, th_ref, thgt_ref, out_ref):
    # inv_denom_ref: (1,) SMEM        1 / (n*h*w*2)
    # gram_ref:      (8, 8) VMEM      zero-padded 3x3 Gram matrix G^T G
    # th_ref:        (8, N2_pad) VMEM theta^T   (flattened (n*2,3), transposed), zero-padded
    # thgt_ref:      (8, N2_pad) VMEM theta_gt^T, zero-padded
    # out_ref:       (1,) SMEM        -> MSE loss
    d = th_ref[...] - thgt_ref[...]                                   # single VPU diff
    gd = jnp.dot(gram_ref[...], d, preferred_element_type=jnp.float32)
    # Zero-padded rows/columns of d and gram contribute exactly 0 to the sum.
    out_ref[0] = jnp.sum(gd * d) * inv_denom_ref[0]


@functools.partial(jax.jit, static_argnames=("h", "w"))
def _grid_loss_call(theta, theta_gt, gram_pad, h, w):
    n = theta.shape[0]
    n2 = 2 * n
    n2_pad = _round_up(n2, 128)          # lane-dense last dim (multiple of 128)

    def pad_theta_t(t):
        tt = t.reshape(n2, 3).astype(jnp.float32).T                   # (3, n2)
        return jnp.zeros((8, n2_pad), jnp.float32).at[:3, :n2].set(tt)

    th = pad_theta_t(theta)
    thgt = pad_theta_t(theta_gt)
    inv_denom = jnp.full((1,), 1.0 / float(n * h * w * 2), jnp.float32)

    out = pl.pallas_call(
        _grid_loss_kernel,
        out_shape=jax.ShapeDtypeStruct((1,), jnp.float32),
        in_specs=[
            pl.BlockSpec(memory_space=pltpu.SMEM),    # inv_denom scalar
            pl.BlockSpec(memory_space=pltpu.VMEM),    # gram (8, 8)
            pl.BlockSpec(memory_space=pltpu.VMEM),    # theta^T (8, N2_pad)
            pl.BlockSpec(memory_space=pltpu.VMEM),    # theta_gt^T (8, N2_pad)
        ],
        out_specs=pl.BlockSpec(memory_space=pltpu.SMEM),
    )(inv_denom, gram_pad, th, thgt)
    return out[0]


def geometric_grid_loss(theta: jnp.ndarray, theta_gt: jnp.ndarray, h: int, w: int):
    """Pallas implementation of GeometricGridLoss.forward.

    theta, theta_gt: (n, 2, 3) affine matrices.
    Returns scalar MSE between the two transformed grids of shape (n, h, w, 2).
    """
    return _grid_loss_call(theta, theta_gt, _gram_pad(h, w), h, w)


def _reference_loss(theta, theta_gt, h, w):
    # pure-JAX reference of the PyTorch semantics (explicit hw-sized grids)
    grid = _make_grid(h, w).reshape(h, w, 3)
    sg = jnp.einsum("nkm,hwm->nhwk", theta.astype(jnp.float32), grid)
    sg_gt = jnp.einsum("nkm,hwm->nhwk", theta_gt.astype(jnp.float32), grid)
    return jnp.mean((sg - sg_gt) ** 2)


if __name__ == "__main__":
    h = w = 16
    n = 2

    key = jax.random.PRNGKey(0)
    k1, k2 = jax.random.split(key)
    theta = jax.random.normal(k1, (n, 2, 3), dtype=jnp.float32)
    theta_gt = jax.random.normal(k2, (n, 2, 3), dtype=jnp.float32)

    loss = geometric_grid_loss(theta, theta_gt, h, w)
    loss = jax.block_until_ready(loss)

    ref = jax.block_until_ready(_reference_loss(theta, theta_gt, h, w))
    assert np.allclose(np.asarray(loss), np.asarray(ref), rtol=1e-5, atol=1e-5), (
        loss, ref)

    print("KERNEL_OK")
</pallas_src>

<mosaic_0001>
module attributes {stable_mosaic.version = 11 : i64} {
  func.func @_grid_loss_kernel(%arg0: memref<1xf32, #tpu.memory_space<smem>>, %arg1: memref<8x8xf32, #tpu.memory_space<vmem>>, %arg2: memref<8x128xf32, #tpu.memory_space<vmem>>, %arg3: memref<8x128xf32, #tpu.memory_space<vmem>>, %arg4: memref<1xf32, #tpu.memory_space<smem>>) attributes {dimension_semantics = [], scalar_prefetch = 0 : i64, scratch_operands = 0 : i64, tpu.core_type = #tpu.core_type<tc>} {
    %c0 = arith.constant 0 : index
    %c0_0 = arith.constant 0 : index
    %0 = vector.load %arg2[%c0, %c0_0] : memref<8x128xf32, #tpu.memory_space<vmem>>, vector<8x128xf32>
    %c0_1 = arith.constant 0 : index
    %c0_2 = arith.constant 0 : index
    %1 = vector.load %arg3[%c0_1, %c0_2] : memref<8x128xf32, #tpu.memory_space<vmem>>, vector<8x128xf32>
    %2 = arith.subf %0, %1 : vector<8x128xf32>
    %c0_3 = arith.constant 0 : index
    %c0_4 = arith.constant 0 : index
    %3 = vector.load %arg1[%c0_3, %c0_4] : memref<8x8xf32, #tpu.memory_space<vmem>>, vector<8x8xf32>
    %cst = arith.constant dense<0.000000e+00> : vector<8x128xf32>
    %4 = tpu.matmul %3, %2, %cst {dimension_numbers = #tpu.dot_dimension_numbers<[1], [0], [0], [1], [0, 0, 1, 1], [], []>} : vector<8x8xf32>, vector<8x128xf32>, vector<8x128xf32> -> vector<8x128xf32>
    %5 = arith.mulf %4, %2 : vector<8x128xf32>
    %6 = vector.shape_cast %5 : vector<8x128xf32> to vector<1x8x128xf32>
    %cst_5 = arith.constant dense<0.000000e+00> : vector<1xf32>
    %7 = vector.multi_reduction <add>, %6, %cst_5 [1, 2] : vector<1x8x128xf32> to vector<1xf32>
    %8 = vector.shape_cast %7 : vector<1xf32> to vector<1x1x1xf32>
    %9 = vector.extract %8[0, 0, 0] : f32 from vector<1x1x1xf32>
    %c0_6 = arith.constant 0 : index
    %10 = memref.load %arg0[%c0_6] : memref<1xf32, #tpu.memory_space<smem>>
    %11 = arith.mulf %9, %10 : f32
    %c0_7 = arith.constant 0 : index
    %12 = memref.load %arg4[%c0_7] : memref<1xf32, #tpu.memory_space<smem>>
    memref.store %11, %arg4[%c0_7] : memref<1xf32, #tpu.memory_space<smem>>
    return
  }
}

</mosaic_0001>

<llo_original>
// kernel: _grid_loss_call.1
$region0: #{_grid_loss_call.1}
  #allocation0 [shape = 'u32[]', space=smem, size = 0x4, offset = 0x4, fixed_abs, tag = 'smem constant byte address 0x4 - core index']
  #allocation1 [shape = 'u32[144,128]{1,0:T(1,128)}', space=vmem, size = 0x12000, scoped, tag = 'internal scratch']
  #allocation2 [shape = 'f32[1]{0:T(128)S(6)}', space=smem, size = 0x200, scoped, tag = 'scoped memory for _grid_loss_call.1']
  %s0 = inlined_call_operand.<no memory space> [shape: f32[1], index: 0, kind: input, shape index: {}]
  %s1 = inlined_call_operand.vmem [shape: f32[8,8], index: 1, kind: input, shape index: {}]
  %s2 = inlined_call_operand.vmem [shape: f32[8,128], index: 2, kind: input, shape index: {}]
  %s3 = inlined_call_operand.vmem [shape: f32[8,128], index: 3, kind: input, shape index: {}]
  %s4 = inlined_call_operand.hbm [shape: f32[1], index: 4, kind: output, shape index: {}]
  %s5 = sld [smem:[#allocation0]]
  $region26: #{_grid_loss_call.1} parent=0
    _
  %s7 = ssub.s32 1, %s5
  %s8 = scalar_select 0, %s7, %s5
  %9 = sst [smem:[#allocation2]] %s0
  $region1: #{_grid_loss_call.1} parent=0
    #allocation3 [shape = 'u8[512]{0}', space=smem, size = 0x200, scoped, tag = 'output window, operand 0, single buffered']
    #allocation4 [shape = 's32[1]{0}', space=sflag, size = 0x4, scoped, tag = 'scoped memory for _grid_loss_call.1']
    %10 = vsyncpa [#allocation4], 0
    // Predicated region
    $region2: #{_grid_loss_call.1} parent=1 // pred_check
      _
    $region3: #{_grid_loss_call.1} parent=1 // pred_check_branch
      %12 = sbr.rel (0) target = $region5
    $region4: #{_grid_loss_call.1} parent=1 // pred_region
      _
    $region5: #{_grid_loss_call.1} parent=1 // pred_fallthru
      _
    // Predicated region
    $region6: #{_grid_loss_call.1} parent=1 // pred_check
      _
    $region7: #{_grid_loss_call.1} parent=1 // pred_check_branch
      %14 = sbr.rel (0) target = $region9
    $region8: #{_grid_loss_call.1} parent=1 // pred_region
      _
    $region9: #{_grid_loss_call.1} parent=1 // pred_fallthru
      _
    // Predicated region
    $region10: #{_grid_loss_call.1} parent=1 // pred_check
      _
    $region11: #{_grid_loss_call.1} parent=1 // pred_check_branch
      %16 = sbr.rel (0) target = $region13
    $region12: #{_grid_loss_call.1} parent=1 // pred_region
      _
    $region13: #{_grid_loss_call.1} parent=1 // pred_fallthru
      _
    // Predicated region
    $region14: #{_grid_loss_call.1} parent=1 // pred_check
      _
    $region15: #{_grid_loss_call.1} parent=1 // pred_check_branch
      %18 = sbr.rel (0) target = $region17
    $region16: #{_grid_loss_call.1} parent=1 // pred_region
      _
    $region17: #{_grid_loss_call.1} parent=1 // pred_fallthru
      _
    %v19 = vld [vmem:[%s2] sm:$0xff]
    %v20 = vld [vmem:[%s3] sm:$0xff]
    %v21 = vsub.f32 %v19, %v20
    %v22 = vld [vmem:[%s1] sm:$0xff]
    %vm23 = vcmask 64512
    %v25 = vsel %vm23, %v22, 0
    %27 = vmatprep.subr.mxu0 0.0
    %28 = vmatpush1.msra.mxu0 0.0
    %29 = vmatprep.subr.mxu0 0.0
    %30 = vmatpush1.msra.mxu0 0.0
    %31 = vmatprep.subr.mxu0 0.0
    %32 = vmatpush1.msra.mxu0 0.0
    %33 = vmatprep.subr.mxu0 0.0
    %34 = vmatpush1.msra.mxu0 0.0
    %35 = vmatprep.subr.mxu0 0.0
    %36 = vmatpush1.msra.mxu0 0.0
    %37 = vmatprep.subr.mxu0 0.0
    %38 = vmatpush1.msra.mxu0 0.0
    %39 = vmatprep.subr.mxu0 0.0
    %40 = vmatpush1.msra.mxu0 0.0
    %41 = vmatprep.subr.mxu0 0.0
    %42 = vmatpush1.msra.mxu0 0.0
    %43 = vmatprep.subr.mxu0 0.0
    %44 = vmatpush1.msra.mxu0 0.0
    %45 = vmatprep.subr.mxu0 0.0
    %46 = vmatpush1.msra.mxu0 0.0
    %47 = vmatprep.subr.mxu0 0.0
    %48 = vmatpush1.msra.mxu0 0.0
    %49 = vmatprep.subr.mxu0 0.0
    %50 = vmatpush1.msra.mxu0 0.0
    %51 = vmatprep.subr.mxu0 0.0
    %52 = vmatpush1.msra.mxu0 0.0
    %53 = vmatprep.subr.mxu0 0.0
    %54 = vmatpush1.msra.mxu0 0.0
    %55 = vmatprep.subr.mxu0 0.0
    %56 = vmatpush1.msra.mxu0 0.0
    %57 = vmatprep.subr.mxu0 0.0
    %58 = vmatpush1.msra.mxu0 %v21
    %59 = vmatprep.subr.mxu0 0.0
    %60 = vmatpush2.msra.mxu0 0.0
    %61 = vmatprep.subr.mxu0 0.0
    %62 = vmatpush2.msra.mxu0 0.0
    %63 = vmatprep.subr.mxu0 0.0
    %64 = vmatpush2.msra.mxu0 0.0
    %65 = vmatprep.subr.mxu0 0.0
    %66 = vmatpush2.msra.mxu0 0.0
    %67 = vmatprep.subr.mxu0 0.0
    %68 = vmatpush2.msra.mxu0 0.0
    %69 = vmatprep.subr.mxu0 0.0
    %70 = vmatpush2.msra.mxu0 0.0
    %71 = vmatprep.subr.mxu0 0.0
    %72 = vmatpush2.msra.mxu0 0.0
    %73 = vmatprep.subr.mxu0 0.0
    %74 = vmatpush2.msra.mxu0 0.0
    %75 = vmatprep.subr.mxu0 0.0
    %76 = vmatpush2.msra.mxu0 0.0
    %77 = vmatprep.subr.mxu0 0.0
    %78 = vmatpush2.msra.mxu0 0.0
    %79 = vmatprep.subr.mxu0 0.0
    %80 = vmatpush2.msra.mxu0 0.0
    %81 = vmatprep.subr.mxu0 0.0
    %82 = vmatpush2.msra.mxu0 0.0
    %83 = vmatprep.subr.mxu0 0.0
    %84 = vmatpush2.msra.mxu0 0.0
    %85 = vmatprep.subr.mxu0 0.0
    %86 = vmatpush2.msra.mxu0 0.0
    %87 = vmatprep.subr.mxu0 0.0
    %88 = vmatpush2.msra.mxu0 0.0
    %89 = vmatprep.subr.mxu0 0.0
    %90 = vmatpush2.msra.mxu0 0.0
    %91 = vmatprep.mubr.f32.mxu0 0.0
    %92 = vmatmul.mubr.f32.gmra.mxu0 %v25
    %v93 = vpop.f32.mrf.mxu0
    %v94 = vadd.f32 0.0, %v93
    %v95 = vpop.f32.mrf.mxu0
    %96 = vdwg.mxu0
    %v97 = vmul.f32 %v94, %v21
    %98 = vadd.xlane.f32.xlu0 %v97
    %v99 = vpop.xlane.xlu0 %98
    %v100 = vrot.slane %v99, 4
    %v101 = vadd.f32 %v99, %v100
    %v102 = vrot.slane %v101, 2
    %v103 = vadd.f32 %v101, %v102
    %v104 = vrot.slane %v103, 1
    %v105 = vadd.f32 %v103, %v104
    %s106 = vtos %v105
    %s107 = sld [smem:[#allocation2]]
    %s108 = smul.f32 %s106, %s107
    %s109 = scalar_lea.smem [#allocation3], 0
    %110 = sst [smem:[%s109]] %s108
    // Predicated region
    $region18: #{_grid_loss_call.1} parent=1 // pred_check
      _
    $region19: #{_grid_loss_call.1} parent=1 // pred_check_branch
      %112 = sbr.rel (0) target = $region21
    $region20: #{_grid_loss_call.1} parent=1 // pred_region
      %s114 = ssub.s32 16, 16
      %115 = vsyncadd [#allocation4], %s114
      %118 = dma.smem_to_hbm [#allocation3], 16, %s4, [#allocation4]
    $region21: #{_grid_loss_call.1} parent=1 // pred_fallthru
      _
    // Predicated region
    $region22: #{_grid_loss_call.1} parent=1 // pred_check
      _
    $region23: #{_grid_loss_call.1} parent=1 // pred_check_branch
      %120 = sbr.rel (0) target = $region25
    $region24: #{_grid_loss_call.1} parent=1 // pred_region
      %121 = dma.done [#allocation4], 16
    $region25: #{_grid_loss_call.1} parent=1 // pred_fallthru
      _
    %122 = sfence
    %123 = vsyncpa [#allocation4], 1

</llo_original>
